<compile_context>
chip_gen: v7x
topology: tpu7x:2x2x1
jax: 0.10.0
libtpu: 0.0.40
codegen_flags: <defaults>
</compile_context>

<pallas_src>
import functools

import jax
import jax.numpy as jnp
from jax.experimental import pallas as pl
from jax.experimental.pallas import tpu as pltpu


_RAND_BITS = 24
_RAND_MAX = 1 << _RAND_BITS            # dropout keep-threshold resolution


def _round_up(n, m):
    return ((n + m - 1) // m) * m


def _dropout_threshold(p):
    # keep element iff r >= thr, r uniform in [0, 2^24)
    return min(int(round(p * _RAND_MAX)), _RAND_MAX)


def _make_dropout_bits(key, shape_in, shape_out):
    """Uniform int32 values in [0, 2^24) for the two dropout masks."""
    k1, k2 = jax.random.split(key)
    r1 = jax.random.randint(k1, shape_in, 0, _RAND_MAX, dtype=jnp.int32)
    r2 = jax.random.randint(k2, shape_out, 0, _RAND_MAX, dtype=jnp.int32)
    return r1, r2


def _make_proj_kernel(p, training):
    inv_keep = (1.0 / (1.0 - p)) if p < 1.0 else 0.0
    thr = _dropout_threshold(p)

    if training:
        def kernel(x_ref, r1_ref, r2_ref, w_ref, b_ref, o_ref):
            # x_ref: (1, C_in, tT)  r1_ref: (1, C_in, tT) int32
            # r2_ref: (1, C_out, tT) int32  w_ref: (C_out, C_in)
            # b_ref: (C_out, 1)  o_ref: (1, C_out, tT)
            x = x_ref[0]                                         # native dtype
            # dropout1: integer-threshold keep mask, mask-multiply
            keep1 = (r1_ref[0] >= thr).astype(x.dtype) * inv_keep
            x = x * keep1
            # Linear over channel axis (MXU, f32 accumulate)
            y = jnp.dot(w_ref[...], x, preferred_element_type=jnp.float32)
            y = y + b_ref[...].astype(jnp.float32)
            y = jnp.maximum(y, 0.0)                              # ReLU
            # dropout2
            keep2 = (r2_ref[0] >= thr).astype(jnp.float32) * inv_keep
            y = y * keep2
            o_ref[0] = y.astype(o_ref.dtype)
        return kernel

    def kernel(x_ref, w_ref, b_ref, o_ref):
        y = jnp.dot(w_ref[...], x_ref[0], preferred_element_type=jnp.float32)
        y = y + b_ref[...].astype(jnp.float32)
        y = jnp.maximum(y, 0.0)
        o_ref[0] = y.astype(o_ref.dtype)
    return kernel


@functools.partial(jax.jit, static_argnames=("p", "training", "t_tile"))
def projection_forward(x, w, b, dropout_bits=None, *, p=0.5, training=False,
                       t_tile=None):
    """x: (B, C_in, T); w: (C_out, C_in); b: (C_out,).
    dropout_bits: (r_in (B,C_in,T) int32, r_out (B,C_out,T) int32), training only."""
    B, C_in, T = x.shape
    C_out = w.shape[0]

    # Lane-dense T tiling: tiles are multiples of 128; pad T up to whole tiles.
    if t_tile is None:
        t_tile = min(512, _round_up(T, 128))
    t_tile = _round_up(int(t_tile), 128)
    T_pad = _round_up(T, t_tile)
    pad_t = T_pad - T
    grid = (B, T_pad // t_tile)

    if pad_t:
        x = jnp.pad(x, ((0, 0), (0, 0), (0, pad_t)))

    b2d = b.reshape(C_out, 1)

    x_spec = pl.BlockSpec((1, C_in, t_tile), lambda bi, ti: (bi, 0, ti))
    o_spec = pl.BlockSpec((1, C_out, t_tile), lambda bi, ti: (bi, 0, ti))
    w_spec = pl.BlockSpec((C_out, C_in), lambda bi, ti: (0, 0))   # resident
    b_spec = pl.BlockSpec((C_out, 1), lambda bi, ti: (0, 0))      # resident

    kernel = _make_proj_kernel(p, training)

    if training:
        if dropout_bits is None:
            raise ValueError("training=True requires dropout_bits=(r_in, r_out)")
        r1, r2 = dropout_bits
        if pad_t:
            r1 = jnp.pad(r1, ((0, 0), (0, 0), (0, pad_t)))
            r2 = jnp.pad(r2, ((0, 0), (0, 0), (0, pad_t)))
        args = (x, r1, r2, w, b2d)
        in_specs = [
            x_spec,
            pl.BlockSpec((1, C_in, t_tile), lambda bi, ti: (bi, 0, ti)),
            pl.BlockSpec((1, C_out, t_tile), lambda bi, ti: (bi, 0, ti)),
            w_spec, b_spec,
        ]
    else:
        args = (x, w, b2d)
        in_specs = [x_spec, w_spec, b_spec]

    # Cost estimate (helps XLA schedule around the custom call).
    flops = 2 * B * C_out * C_in * T_pad
    bytes_accessed = (sum(int(a.size) * a.dtype.itemsize for a in args)
                      + B * C_out * T_pad * x.dtype.itemsize)

    # VMEM budget: double-buffered x/out (+mask) tiles + resident W/bias,
    # with 4x headroom, capped under v7x's 64 MiB physical VMEM.
    elt = x.dtype.itemsize
    work_set = (2 * C_in * t_tile * elt            # x double-buffer
                + 2 * C_out * t_tile * elt         # out double-buffer
                + C_out * C_in * elt + C_out * elt)
    if training:
        work_set += 2 * (C_in + C_out) * t_tile * 4   # int32 mask tiles
    vmem_limit = int(min(max(4 * work_set, 8 * 1024 * 1024), 48 * 1024 * 1024))

    out = pl.pallas_call(
        kernel,
        out_shape=jax.ShapeDtypeStruct((B, C_out, T_pad), x.dtype),
        grid=grid,
        in_specs=in_specs,
        out_specs=o_spec,
        compiler_params=pltpu.CompilerParams(
            dimension_semantics=("parallel", "parallel"),
            vmem_limit_bytes=vmem_limit,
        ),
        cost_estimate=pl.CostEstimate(
            flops=flops, transcendentals=0, bytes_accessed=bytes_accessed),
    )(*args)

    if pad_t:
        out = out[:, :, :T]
    return out


# ----------------------------- references ----------------------------------

def _reference_eval(x, w, b):
    xt = jnp.swapaxes(x, 1, 2)                               # (B, T, C_in)
    y = jnp.matmul(xt, w.T, precision=jax.lax.Precision.HIGHEST) + b
    y = jnp.maximum(y, 0.0)
    return jnp.swapaxes(y, 1, 2)                             # (B, C_out, T)


def _reference_train(x, w, b, r1, r2, p):
    thr = _dropout_threshold(p)
    inv_keep = (1.0 / (1.0 - p)) if p < 1.0 else 0.0
    xd = x * (r1 >= thr).astype(x.dtype) * inv_keep
    y = _reference_eval(xd, w, b)
    return y * (r2 >= thr).astype(y.dtype) * inv_keep


if __name__ == "__main__":
    B, C_IN, C_OUT, T = 2, 16, 8, 512
    P = 0.5

    key = jax.random.PRNGKey(0)
    kx, kw, kb, kd = jax.random.split(key, 4)

    x = jax.random.normal(kx, (B, C_IN, T), dtype=jnp.float32)
    # nn.Linear-style init: U(-1/sqrt(in_ch), 1/sqrt(in_ch))
    bound = 1.0 / (C_IN ** 0.5)
    w = jax.random.uniform(kw, (C_OUT, C_IN), minval=-bound, maxval=bound,
                           dtype=jnp.float32)
    b = jax.random.uniform(kb, (C_OUT,), minval=-bound, maxval=bound,
                           dtype=jnp.float32)

    # --- eval mode (dropout = identity), checked against a pure-JAX reference ---
    out = jax.block_until_ready(
        projection_forward(x, w, b, p=P, training=False, t_tile=128))
    ref = _reference_eval(x, w, b)
    assert out.shape == (B, C_OUT, T)
    assert jnp.allclose(out, ref, atol=1e-4, rtol=1e-4)

    # --- training mode: dropout masks from jax.random, exactly reproducible ---
    r1, r2 = _make_dropout_bits(kd, (B, C_IN, T), (B, C_OUT, T))
    out_tr = jax.block_until_ready(
        projection_forward(x, w, b, dropout_bits=(r1, r2), p=P, training=True,
                           t_tile=128))
    ref_tr = _reference_train(x, w, b, r1, r2, P)
    assert out_tr.shape == (B, C_OUT, T)
    assert jnp.allclose(out_tr, ref_tr, atol=1e-4, rtol=1e-4)

    print("KERNEL_OK")
</pallas_src>

<mosaic_0001>
module attributes {stable_mosaic.version = 11 : i64} {
  func.func @kernel(%arg0: i32, %arg1: i32, %arg2: memref<1x16x128xf32, #tpu.memory_space<vmem>>, %arg3: memref<8x16xf32, #tpu.memory_space<vmem>>, %arg4: memref<8x1xf32, #tpu.memory_space<vmem>>, %arg5: memref<1x8x128xf32, #tpu.memory_space<vmem>>) attributes {dimension_semantics = [#tpu.dimension_semantics<parallel>, #tpu.dimension_semantics<parallel>], iteration_bounds = array<i64: 2, 4>, scalar_prefetch = 0 : i64, scratch_operands = 0 : i64, tpu.core_type = #tpu.core_type<tc>, window_params = [{transform_indices = @transform_0, window_bounds = array<i64: 1, 16, 128>}, {pipeline_mode = #tpu.pipeline_mode<synchronous>, transform_indices = @transform_1, window_bounds = array<i64: 8, 16>}, {pipeline_mode = #tpu.pipeline_mode<synchronous>, transform_indices = @transform_2, window_bounds = array<i64: 8, 1>}, {transform_indices = @transform_3, window_bounds = array<i64: 1, 8, 128>}]} {
    %c0 = arith.constant 0 : index
    %c0_0 = arith.constant 0 : index
    %0 = vector.load %arg3[%c0, %c0_0] : memref<8x16xf32, #tpu.memory_space<vmem>>, vector<8x16xf32>
    %c0_1 = arith.constant 0 : index
    %c0_2 = arith.constant 0 : index
    %c0_3 = arith.constant 0 : index
    %1 = vector.load %arg2[%c0_1, %c0_2, %c0_3] : memref<1x16x128xf32, #tpu.memory_space<vmem>>, vector<1x16x128xf32>
    %2 = vector.shape_cast %1 : vector<1x16x128xf32> to vector<16x128xf32>
    %cst = arith.constant dense<0.000000e+00> : vector<8x128xf32>
    %3 = tpu.matmul %0, %2, %cst {dimension_numbers = #tpu.dot_dimension_numbers<[1], [0], [0], [1], [0, 0, 1, 1], [], []>} : vector<8x16xf32>, vector<16x128xf32>, vector<8x128xf32> -> vector<8x128xf32>
    %c0_4 = arith.constant 0 : index
    %c0_5 = arith.constant 0 : index
    %4 = vector.load %arg4[%c0_4, %c0_5] : memref<8x1xf32, #tpu.memory_space<vmem>>, vector<8x1xf32>
    %5 = vector.broadcast %4 : vector<8x1xf32> to vector<8x128xf32>
    %6 = arith.addf %3, %5 : vector<8x128xf32>
    %cst_6 = arith.constant 0.000000e+00 : f32
    %7 = vector.broadcast %cst_6 : f32 to vector<8x128xf32>
    %8 = arith.maximumf %6, %7 : vector<8x128xf32>
    %c0_7 = arith.constant 0 : index
    %c0_8 = arith.constant 0 : index
    %c0_9 = arith.constant 0 : index
    %9 = vector.load %arg5[%c0_7, %c0_8, %c0_9] : memref<1x8x128xf32, #tpu.memory_space<vmem>>, vector<1x8x128xf32>
    %10 = vector.shape_cast %9 : vector<1x8x128xf32> to vector<8x128xf32>
    %11 = vector.shape_cast %8 : vector<8x128xf32> to vector<1x8x128xf32>
    tpu.vector_store %arg5[%c0_7, %c0_8, %c0_9], %11 {strides = array<i32>} : memref<1x8x128xf32, #tpu.memory_space<vmem>>, vector<1x8x128xf32>,
    return
  }
  func.func @transform_0(%arg0: i32, %arg1: i32) -> (i32, i32, i32) {
    %c0_i32 = arith.constant 0 : i32
    %c0_i32_0 = arith.constant 0 : i32
    return %arg0, %c0_i32, %arg1 : i32, i32, i32
  }
  func.func @transform_1(%arg0: i32, %arg1: i32) -> (i32, i32) {
    %c0_i32 = arith.constant 0 : i32
    %c0_i32_0 = arith.constant 0 : i32
    %c0_i32_1 = arith.constant 0 : i32
    return %c0_i32, %c0_i32_0 : i32, i32
  }
  func.func @transform_2(%arg0: i32, %arg1: i32) -> (i32, i32) {
    %c0_i32 = arith.constant 0 : i32
    %c0_i32_0 = arith.constant 0 : i32
    %c0_i32_1 = arith.constant 0 : i32
    return %c0_i32, %c0_i32_0 : i32, i32
  }
  func.func @transform_3(%arg0: i32, %arg1: i32) -> (i32, i32, i32) {
    %c0_i32 = arith.constant 0 : i32
    %c0_i32_0 = arith.constant 0 : i32
    return %arg0, %c0_i32, %arg1 : i32, i32, i32
  }
}

</mosaic_0001>

<llo_original>
// kernel: projection_forward.1
$region0: #{projection_forward.1}
  #allocation0 [shape = 'u32[]', space=smem, size = 0x4, offset = 0x4, fixed_abs, tag = 'smem constant byte address 0x4 - core index']
  #allocation1 [shape = 'u32[144,128]{1,0:T(1,128)}', space=vmem, size = 0x12000, scoped, tag = 'internal scratch']
  %s0 = inlined_call_operand.hbm [shape: f32[2,16,512], index: 0, kind: input, shape index: {}]
  %s1 = inlined_call_operand.vmem [shape: f32[8,16], index: 1, kind: input, shape index: {}]
  %s2 = inlined_call_operand.vmem [shape: f32[8,1], index: 2, kind: input, shape index: {}]
  %s3 = inlined_call_operand.hbm [shape: f32[2,8,512], index: 3, kind: output, shape index: {}]
  %s4 = sld [smem:[#allocation0]]
  $region49: #{projection_forward.1} parent=0
    _
  %s6 = ssub.s32 1, %s4
  %s7 = scalar_select 0, %s6, %s4
  $region1: #{projection_forward.1} parent=0
    #allocation2 [shape = 'u8[16384]{0}', space=vmem, size = 0x4000, scoped, tag = 'input window, operand 0']
    #allocation3 [shape = 's32[2]{0}', space=sflag, size = 0x8, scoped, tag = 'scoped memory for projection_forward.1']
    #allocation4 [shape = 's32[2]{0}', space=sflag, size = 0x8, scoped, tag = 'scoped memory for projection_forward.1']
    #allocation5 [shape = 'u8[8192]{0}', space=vmem, size = 0x2000, scoped, tag = 'output window, operand 0']
    %8 = vsyncpa [#allocation3], 0
    %s9 = scalar_lea.sflag [#allocation3], 1
    %10 = vsyncpa %s9, 0
    %11 = vsyncpa [#allocation4], 0
    %s12 = scalar_lea.sflag [#allocation4], 1
    %13 = vsyncpa %s12, 0
    loop: start=0, step=1, limit=10
    $region2: #{projection_forward.1} parent=1 // loop_pre_header
      _
    $region3: #{projection_forward.1} parent=1 // loop_header
      %s15 = sphi 0, %s19
      %p16 = scmp.ge.s32.totalorder %s15, 10
      %s22 = sphi 0, %s34
      %s23 = sphi 0, %s30
      %s24 = sphi 0, %s22
      %s25 = sphi 0, %s23
      %s26 = sphi 0, %s24
      %s27 = sphi 0, %s25
      %s39 = sphi 0, %s41
      %s42 = sphi 0, %s39
      %s43 = sphi 0, %s42
      %s59 = sphi 0, %s43
      %s63 = sphi 0, %s63
      %s65 = sphi 0, %s63
      %s66 = sphi 0, %s65
      %s80 = sphi 0, %s66
      %s84 = sphi 0, %s84
      %s86 = sphi 0, %s84
      %s87 = sphi 0, %s86
      %s101 = sphi 0, %s87
      %s109 = sphi 0, %s111
      %s112 = sphi 0, %s109
      %s113 = sphi 0, %s112
      %s129 = sphi 0, %s113
    $region4: #{projection_forward.1} parent=1 // loop_header_branch
      %18 = sbr.rel (%p16) target = $region8
    $region5: #{projection_forward.1} parent=1 // loop_body
      %s20 = ssub.s32 %s15, 1
      %s21 = ssub.s32 %s15, 2
      %s28 = sadd.s32 1, %s23
      %p29 = scmp.ge.s32.totalorder %s28, 4
      %s30 = scalar_select %p29, 0, %s28
      %s31 = sadd.s32 1, %s22
      %s32 = scalar_select %p29, %s31, %s22
      %p33 = scmp.ge.s32.totalorder %s32, 2
      %s34 = scalar_select %p33, 0, %s32
      %s35 = ssub.s32 %s22, %s34
      %s36 = ssub.s32 %s23, %s30
      %s37 = sor.u32 %s35, %s36
      %p38 = scmp.eq.s32.totalorder %s37, 0
      %s40 = sadd.s32 %s39, 1
      %s41 = scalar_select %p38, %s39, %s40
      %p44 = pneg %p38
      %p45 = scmp.eq.s32.totalorder %s15, 7
      %p46 = por %p44, %p45
      %p47 = scmp.ne.s32.totalorder %s39, %s42
      %p48 = scmp.eq.s32.totalorder %s15, 0
      %p49 = por %p47, %p48
      %p50 = scmp.ne.s32.totalorder %s39, %s42
      %p51 = scmp.eq.s32.totalorder %s20, 7
      %p52 = por %p50, %p51
      %p53 = scmp.ne.s32.totalorder %s42, %s43
      %p54 = scmp.eq.s32.totalorder %s20, 0
      %p55 = por %p53, %p54
      %p56 = scmp.ne.s32.totalorder %s42, %s43
      %p57 = scmp.eq.s32.totalorder %s21, 7
      %p58 = por %p56, %p57
      %p60 = scmp.ne.s32.totalorder %s43, %s59
      %p61 = scmp.eq.s32.totalorder %s21, 0
      %p62 = por %p60, %p61
      %s64 = sadd.s32 %s63, 1
      %p67 = scmp.eq.s32.totalorder %s15, 7
      %p68 = scmp.ne.s32.totalorder %s63, %s65
      %p69 = scmp.eq.s32.totalorder %s15, 0
      %p70 = por %p68, %p69
      %p71 = scmp.ne.s32.totalorder %s63, %s65
      %p72 = scmp.eq.s32.totalorder %s20, 7
      %p73 = por %p71, %p72
      %p74 = scmp.ne.s32.totalorder %s65, %s66
      %p75 = scmp.eq.s32.totalorder %s20, 0
      %p76 = por %p74, %p75
      %p77 = scmp.ne.s32.totalorder %s65, %s66
      %p78 = scmp.eq.s32.totalorder %s21, 7
      %p79 = por %p77, %p78
      %p81 = scmp.ne.s32.totalorder %s66, %s80
      %p82 = scmp.eq.s32.totalorder %s21, 0
      %p83 = por %p81, %p82
      %s85 = sadd.s32 %s84, 1
      %p88 = scmp.eq.s32.totalorder %s15, 7
      %p89 = scmp.ne.s32.totalorder %s84, %s86
      %p90 = scmp.eq.s32.totalorder %s15, 0
      %p91 = por %p89, %p90
      %p92 = scmp.ne.s32.totalorder %s84, %s86
      %p93 = scmp.eq.s32.totalorder %s20, 7
      %p94 = por %p92, %p93
      %p95 = scmp.ne.s32.totalorder %s86, %s87
      %p96 = scmp.eq.s32.totalorder %s20, 0
      %p97 = por %p95, %p96
      %p98 = scmp.ne.s32.totalorder %s86, %s87
      %p99 = scmp.eq.s32.totalorder %s21, 7
      %p100 = por %p98, %p99
      %p102 = scmp.ne.s32.totalorder %s87, %s101
      %p103 = scmp.eq.s32.totalorder %s21, 0
      %p104 = por %p102, %p103
      %s105 = ssub.s32 %s22, %s34
      %s106 = ssub.s32 %s23, %s30
      %s107 = sor.u32 %s105, %s106
      %p108 = scmp.eq.s32.totalorder %s107, 0
      %s110 = sadd.s32 %s109, 1
      %s111 = scalar_select %p108, %s109, %s110
      %p114 = pneg %p108
      %p115 = scmp.eq.s32.totalorder %s15, 7
      %p116 = por %p114, %p115
      %p117 = scmp.ne.s32.totalorder %s109, %s112
      %p118 = scmp.eq.s32.totalorder %s15, 0
      %p119 = por %p117, %p118
      %p120 = scmp.ne.s32.totalorder %s109, %s112
      %p121 = scmp.eq.s32.totalorder %s20, 7
      %p122 = por %p120, %p121
      %p123 = scmp.ne.s32.totalorder %s112, %s113
      %p124 = scmp.eq.s32.totalorder %s20, 0
      %p125 = por %p123, %p124
      %p126 = scmp.ne.s32.totalorder %s112, %s113
      %p127 = scmp.eq.s32.totalorder %s21, 7
      %p128 = por %p126, %p127
      %p130 = scmp.ne.s32.totalorder %s113, %s129
      %p131 = scmp.eq.s32.totalorder %s21, 0
      %p132 = por %p130, %p131
      %p133 = scmp.le.s32.totalorder 1, %s15
      %p134 = scmp.lt.s32.totalorder %s15, 9
      %p135 = pnand %p133, %p134
      %p136 = pneg %p135
      // Predicated region
      $region9: #{projection_forward.1} parent=5 // pred_check
        _
      $region10: #{projection_forward.1} parent=5 // pred_check_branch
        %138 = sbr.rel (%p135) target = $region12
      $region11: #{projection_forward.1} parent=5 // pred_region
        %s139 = ssub.s32 %s15, 1
        // Predicated region
        $region13: #{projection_forward.1} parent=11 // pred_check
          %p140 = pneg %p76
        $region14: #{projection_forward.1} parent=11 // pred_check_branch
          %142 = sbr.rel (%p140) target = $region16
        $region15: #{projection_forward.1} parent=11 // pred_region
          _
        $region16: #{projection_forward.1} parent=11 // pred_fallthru
          _
        // Predicated region
        $region17: #{projection_forward.1} parent=11 // pred_check
          %p143 = pneg %p97
        $region18: #{projection_forward.1} parent=11 // pred_check_branch
          %145 = sbr.rel (%p143) target = $region20
        $region19: #{projection_forward.1} parent=11 // pred_region
          _
        $region20: #{projection_forward.1} parent=11 // pred_fallthru
          _
      $region12: #{projection_forward.1} parent=5 // pred_fallthru
        _
      %p146 = scmp.lt.s32.totalorder %s15, 8
      // Predicated region
      $region21: #{projection_forward.1} parent=5 // pred_check
        %p147 = pneg %p146
      $region22: #{projection_forward.1} parent=5 // pred_check_branch
        %149 = sbr.rel (%p147) target = $region24
      $region23: #{projection_forward.1} parent=5 // pred_region
        // Predicated region
        $region25: #{projection_forward.1} parent=23 // pred_check
          %p150 = pneg %p49
        $region26: #{projection_forward.1} parent=23 // pred_check_branch
          %152 = sbr.rel (%p150) target = $region28
        $region27: #{projection_forward.1} parent=23 // pred_region
          %s153 = sand.u32 %s39, 1
          %s154 = scalar_lea.sflag [#allocation3], %s153
          %s155 = sand.u32 %s39, 1
          %s156 = smul.addr %s155, 16
          %s157 = scalar_lea.vmem [#allocation2], %s156
          %s159 = ssub.s32 256, 256
          %160 = vsyncadd %s154, %s159
          %s161 = smul.addr %s22, 8
          %s162 = sadd.s32 %s23, %s161
          %s163 = smul.addr %s162, 128
          %s164 = scalar_lea.hbm %s0, %s163
          %s165 = sshll.u32 %s157, 4
          %s166 = int_to_ptr.vmem [resolvable:$true] %s165
          %171 = dma.hbm_to_vmem [thread:$0]  %s164, 256, %s166, %s154, 512, 128, 8
        $region28: #{projection_forward.1} parent=23 // pred_fallthru
          _
      $region24: #{projection_forward.1} parent=5 // pred_fallthru
        _
      %p172 = scmp.le.s32.totalorder 1, %s15
      %p173 = scmp.lt.s32.totalorder %s15, 9
      %p174 = pnand %p172, %p173
      %p175 = pneg %p174
      // Predicated region
      $region29: #{projection_forward.1} parent=5 // pred_check
        _
      $region30: #{projection_forward.1} parent=5 // pred_check_branch
        %177 = sbr.rel (%p174) target = $region32
      $region31: #{projection_forward.1} parent=5 // pred_region
        %s178 = ssub.s32 %s15, 1
        %s179 = sand.u32 %s42, 1
        %s180 = scalar_lea.sflag [#allocation3], %s179
        %s181 = sand.u32 %s42, 1
        %s182 = smul.addr %s181, 16
        %s183 = scalar_lea.vmem [#allocation2], %s182
        // Predicated region
        $region33: #{projection_forward.1} parent=31 // pred_check
          %p184 = pneg %p55
        $region34: #{projection_forward.1} parent=31 // pred_check_branch
          %186 = sbr.rel (%p184) target = $region36
        $region35: #{projection_forward.1} parent=31 // pred_region
          %187 = dma.done %s180, 256
        $region36: #{projection_forward.1} parent=31 // pred_fallthru
          _
        %s188 = sand.u32 %s42, 1
        %s189 = scalar_lea.sflag [#allocation3], %s188
        %s190 = sand.u32 %s42, 1
        %s191 = smul.addr %s190, 16
        %s192 = scalar_lea.vmem [#allocation2], %s191
        %p193 = pneg %p55
        %p194 = pneg %p52
        %p195 = pneg %p76
        %p196 = pneg %p73
        %p197 = pneg %p97
        %p198 = pneg %p94
        %p199 = pneg %p125
        %p200 = pneg %p122
        %s201 = sand.u32 %s112, 1
        %s202 = scalar_lea.sflag [#allocation4], %s201
        %s203 = sand.u32 %s112, 1
        %s204 = smul.addr %s203, 8
        %s205 = scalar_lea.vmem [#allocation5], %s204
        %v206 = vld [vmem:[%s1] sm:$0xff]
        %v207 = vld [vmem:[%s183] sm:$0xff]
        %v208 = vld [vmem:[%s183 + $0x8] sm:$0xff]
        %v209 = vld [vmem:[%s2] sm:$0xff]
        %211 = vset.pattern.permute.xlu0 0
        %212 = vperm.xlu0 %211, %v209
        %v213 = vpop.permute.xlu0 %212
        %vm215 = vcmask 130048
        %v217 = vsel %vm215, %v206, 0
        %219 = vmatprep.subr.mxu0 0.0
        %220 = vmatpush1.msra.mxu0 %v207
        %221 = vmatprep.subr.mxu0 0.0
        %222 = vmatpush1.msra.mxu0 %v208
        %223 = vmatprep.subr.mxu0 0.0
        %224 = vmatpush1.msra.mxu0 0.0
        %225 = vmatprep.subr.mxu0 0.0
        %226 = vmatpush1.msra.mxu0 0.0
        %227 = vmatprep.subr.mxu0 0.0
        %228 = vmatpush1.msra.mxu0 0.0
        %229 = vmatprep.subr.mxu0 0.0
        %230 = vmatpush1.msra.mxu0 0.0
        %231 = vmatprep.subr.mxu0 0.0
        %232 = vmatpush1.msra.mxu0 0.0
        %233 = vmatprep.subr.mxu0 0.0
        %234 = vmatpush1.msra.mxu0 0.0
        %235 = vmatprep.subr.mxu0 0.0
        %236 = vmatpush1.msra.mxu0 0.0
        %237 = vmatprep.subr.mxu0 0.0
        %238 = vmatpush1.msra.mxu0 0.0
        %239 = vmatprep.subr.mxu0 0.0
        %240 = vmatpush1.msra.mxu0 0.0
        %241 = vmatprep.subr.mxu0 0.0
        %242 = vmatpush1.msra.mxu0 0.0
        %243 = vmatprep.subr.mxu0 0.0
        %244 = vmatpush1.msra.mxu0 0.0
        %245 = vmatprep.subr.mxu0 0.0
        %246 = vmatpush1.msra.mxu0 0.0
        %247 = vmatprep.subr.mxu0 0.0
        %248 = vmatpush1.msra.mxu0 0.0
        %249 = vmatprep.subr.mxu0 0.0
        %250 = vmatpush1.msra.mxu0 0.0
        %251 = vmatprep.subr.mxu0 0.0
        %252 = vmatpush1.msra.mxu0 0.0
        %253 = vmatprep.subr.mxu0 0.0
        %254 = vmatpush1.msra.mxu0 0.0
        %255 = vmatprep.subr.mxu0 0.0
        %256 = vmatpush1.msra.mxu0 0.0
        %257 = vmatprep.subr.mxu0 0.0
        %258 = vmatpush1.msra.mxu0 0.0
        %259 = vmatprep.subr.mxu0 0.0
        %260 = vmatpush1.msra.mxu0 0.0
        %261 = vmatprep.subr.mxu0 0.0
        %262 = vmatpush1.msra.mxu0 0.0
        %263 = vmatprep.subr.mxu0 0.0
        %264 = vmatpush1.msra.mxu0 0.0
        %265 = vmatprep.subr.mxu0 0.0
        %266 = vmatpush1.msra.mxu0 0.0
        %267 = vmatprep.subr.mxu0 0.0
        %268 = vmatpush1.msra.mxu0 0.0
        %269 = vmatprep.subr.mxu0 0.0
        %270 = vmatpush1.msra.mxu0 0.0
        %271 = vmatprep.subr.mxu0 0.0
        %272 = vmatpush1.msra.mxu0 0.0
        %273 = vmatprep.subr.mxu0 0.0
        %274 = vmatpush1.msra.mxu0 0.0
        %275 = vmatprep.subr.mxu0 0.0
        %276 = vmatpush1.msra.mxu0 0.0
        %277 = vmatprep.subr.mxu0 0.0
        %278 = vmatpush1.msra.mxu0 0.0
        %279 = vmatprep.subr.mxu0 0.0
        %280 = vmatpush1.msra.mxu0 0.0
        %281 = vmatprep.subr.mxu0 0.0
        %282 = vmatpush1.msra.mxu0 0.0
        %283 = vmatprep.mubr.f32.mxu0 0.0
        %284 = vmatmul.mubr.f32.gmra.mrb[0].mxu0 %v217
        %v285 = vpop.f32.mrb[0].mxu0
        %v286 = vadd.f32 %v213, %v285
        %v287 = vpop.f32.mrb[0].mxu0
        %288 = vdwg.mxu0
        %v289 = vmax.f32 %v286, 0.0
        %290 = vst [vmem:[%s205] sm:$0xff] %v289
        %s291 = sand.u32 %s112, 1
        %s292 = scalar_lea.sflag [#allocation4], %s291
        %s293 = sand.u32 %s112, 1
        %s294 = smul.addr %s293, 8
        %s295 = scalar_lea.vmem [#allocation5], %s294
        // Predicated region
        $region37: #{projection_forward.1} parent=31 // pred_check
          %p296 = pneg %p122
        $region38: #{projection_forward.1} parent=31 // pred_check_branch
          %298 = sbr.rel (%p296) target = $region40
        $region39: #{projection_forward.1} parent=31 // pred_region
          %s300 = ssub.s32 128, 128
          %301 = vsyncadd %s292, %s300
          %s302 = smul.addr %s24, 4
          %s303 = sadd.s32 %s25, %s302
          %s304 = smul.addr %s303, 128
          %s305 = scalar_lea.hbm %s3, %s304
          %s307 = sshll.u32 %s295, 4
          %s308 = int_to_ptr.vmem [resolvable:$true] %s307
          %310 = dma.vmem_to_hbm [thread:$0]  %s308, 128, %s305, %s292
        $region40: #{projection_forward.1} parent=31 // pred_fallthru
          _
      $region32: #{projection_forward.1} parent=5 // pred_fallthru
        _
      %p311 = scmp.le.s32.totalorder 2, %s15
      // Predicated region
      $region41: #{projection_forward.1} parent=5 // pred_check
        %p312 = pneg %p311
      $region42: #{projection_forward.1} parent=5 // pred_check_branch
        %314 = sbr.rel (%p312) target = $region44
      $region43: #{projection_forward.1} parent=5 // pred_region
        %s315 = ssub.s32 %s15, 2
        // Predicated region
        $region45: #{projection_forward.1} parent=43 // pred_check
          %p316 = pneg %p128
        $region46: #{projection_forward.1} parent=43 // pred_check_branch
          %318 = sbr.rel (%p316) target = $region48
        $region47: #{projection_forward.1} parent=43 // pred_region
          %s319 = sand.u32 %s113, 1
          %s320 = scalar_lea.sflag [#allocation4], %s319
          %s321 = sand.u32 %s113, 1
          %s322 = smul.addr %s321, 8
          %s323 = scalar_lea.vmem [#allocation5], %s322
          %324 = dma.done %s320, 128
        $region48: #{projection_forward.1} parent=43 // pred_fallthru
          _
      $region44: #{projection_forward.1} parent=5 // pred_fallthru
        _
    $region6: #{projection_forward.1} parent=1 // loop_footer
      %s19 = sadd.s32 1, %s15
    $region7: #{projection_forward.1} parent=1 // loop_footer_branch
      %14 = sbr.rel target = $region3
    $region8: #{projection_forward.1} parent=1 // loop_exit
      _
    %325 = vsyncpa [#allocation3], 1
    %s326 = scalar_lea.sflag [#allocation3], 1
    %327 = vsyncpa %s326, 1
    %328 = vsyncpa [#allocation4], 1
    %s329 = scalar_lea.sflag [#allocation4], 1
    %330 = vsyncpa %s329, 1

</llo_original>
